<compile_context>
chip_gen: v5e
topology: v5e:2x2
jax: 0.10.0
libtpu: 0.0.40
codegen_flags: <defaults>
</compile_context>

<pallas_src>
import math
import functools

import jax
import jax.numpy as jnp
from jax.experimental import pallas as pl
from jax.experimental.pallas import tpu as pltpu

_LANE = 128
_X_BLOCK_TARGET = 12 * 1024 * 1024   # aim for ~8-12 MiB x/out blocks


# ---------------------------------------------------------------------------
# small integer helpers (wrapper-level, static shapes only)
# ---------------------------------------------------------------------------
def _sublanes(itemsize: int) -> int:
    """Native sublane count of one vreg tile for this element size."""
    return {8: 8, 4: 8, 2: 16, 1: 32}.get(itemsize, 8)


def _round_up(x: int, m: int) -> int:
    return ((x + m - 1) // m) * m


def _divisors(n: int):
    ds = []
    i = 1
    while i * i <= n:
        if n % i == 0:
            ds.append(i)
            if i != n // i:
                ds.append(n // i)
        i += 1
    return sorted(ds)


def _vmem_limit_and_budget():
    """Scoped VMEM limit handed to Mosaic and the budget our blocks may consume."""
    try:
        cap = int(pltpu.get_tpu_info().vmem_capacity_bytes)
    except Exception:
        cap = 64 * 1024 * 1024            # conservative (v7x-sized) default
    limit = max(32 * 1024 * 1024, min(96 * 1024 * 1024, (cap * 3) // 4))
    budget = limit - 8 * 1024 * 1024      # headroom for Mosaic-internal scratch
    return limit, budget


def _vmem_block_bytes(tb: int, tc: int, s1: int, sub: int, itemsize: int) -> int:
    """VMEM for one tiling choice: double-buffered x, out and PE blocks,
    including sublane padding of partially filled blocks (the old version
    ignored the ~8x padding of a (1, tn) PE block)."""
    x_rows = _round_up(tb, sub)
    pe_rows = _round_up(s1, sub)
    return itemsize * tc * (2 * x_rows + 2 * x_rows + 2 * pe_rows)


def _choose_fold(B: int, S: int, E: int, sub: int, itemsize: int, budget: int) -> int:
    """Pick S1 (PE rows folded into the flattened row axis); S2 = S // S1.

    S1 == 1 reproduces the plain (B, S*E) flattening.  S1 > 1 is used only when
    (a) the batch alone is not sublane-dense, (b) S1 is a multiple of the sublane
    count (so the in-kernel reshape is tile-aligned / free), and (c) the lane axis
    S2*E stays a multiple of 128.
    """
    if B % sub == 0:
        return 1
    best = None
    for s1 in _divisors(S):
        if s1 == 1 or s1 % sub != 0:
            continue
        if ((S // s1) * E) % _LANE != 0:
            continue
        # the minimum forced block is (s1, 128); keep it comfortably inside budget
        if _vmem_block_bytes(s1, _LANE, s1, sub, itemsize) > budget:
            continue
        if best is None or s1 < best:
            best = s1
    return 1 if best is None else best


def _pick_tiles(R: int, C: int, s1: int, B: int, sub: int, itemsize: int, budget: int):
    """Row/lane block sizes under a joint VMEM budget (no unbounded fallback)."""
    # Row tiles: whole PE periods.  Divisor-of-B tiles preferred; power-of-two
    # multiples of the period are added so a large/prime B never forces a huge
    # block (boundary blocks are masked via a cdiv grid).
    tb_set = {k * s1 for k in _divisors(B) if (k * s1) % 8 == 0 or k * s1 == R}
    m = s1 if s1 % 8 == 0 else 8 * s1
    t = m
    while t < R:
        tb_set.add(t)
        t *= 2
    tb_cands = sorted(tb_set)

    # Lane tiles: multiples of 128 (divisors of C when possible, plus power-of-two
    # tiles with a masked boundary), or the full extent when C < 128-aligned.
    tc_set = set()
    if C % _LANE == 0:
        tc_set.update(_LANE * d for d in _divisors(C // _LANE))
    else:
        tc_set.add(C)
    t = _LANE
    while t < C:
        tc_set.add(t)
        t *= 2
    tc_cands = sorted(tc_set)

    best_key, best = None, None
    for tb in tb_cands:
        for tc in tc_cands:
            if _vmem_block_bytes(tb, tc, s1, sub, itemsize) > budget:
                continue
            bb = tb * tc * itemsize
            # reach the block-size target, then prefer minimal overshoot / wide lanes
            key = (min(bb, _X_BLOCK_TARGET), -bb, tc)
            if best_key is None or key > best_key:
                best_key, best = key, (tb, tc)
    if best is None:                       # pathological shapes: smallest legal block
        best = (tb_cands[0], tc_cands[0])
    tb, tc = best

    # Guarantee >= 2 grid steps so both v7x TensorCores get work.
    if pl.cdiv(C, tc) * pl.cdiv(R, tb) == 1:
        if tc % (2 * _LANE) == 0:
            tc //= 2
        elif (tb // s1) % 2 == 0 and (tb // 2) % 8 == 0:
            tb //= 2
    return tb, tc


# ---------------------------------------------------------------------------
# kernel
# ---------------------------------------------------------------------------
def _pos_enc_add_kernel(x_ref, pe_ref, o_ref):
    """o = x + PE with PE broadcast over the (batch-major) row blocks.

    x_ref / o_ref: (tb, tc) tile, tb a multiple of the PE period s1.
    pe_ref:        (s1, tc) tile, identical for every row block (kept resident).
    """
    s1 = pe_ref.shape[0]
    if s1 == 1:
        # (tb, tc) + (1, tc): sublane-broadcast VPU add, lane-dense store.
        o_ref[...] = x_ref[...] + pe_ref[...]
    else:
        tb, tc = x_ref.shape
        k = tb // s1
        # s1 is a multiple of the sublane count, so this reshape is tile-aligned
        # (pure layout reinterpretation, no data movement).
        x = x_ref[...].reshape(k, s1, tc)
        o_ref[...] = (x + pe_ref[...][None, :, :]).reshape(tb, tc)


# ---------------------------------------------------------------------------
# table construction (matches the PyTorch module's __init__)
# ---------------------------------------------------------------------------
def make_positional_encoding(embed_size: int, max_len: int = 100, dtype=jnp.float32):
    assert embed_size % 2 == 0, "embed_size must be even (same as the PyTorch module)"
    position = jnp.arange(max_len, dtype=jnp.float32)[:, None]               # (L, 1)
    div_term = jnp.exp(jnp.arange(0, embed_size, 2, dtype=jnp.float32)
                       * (-math.log(10000.0) / embed_size))                  # (E/2,)
    angles = position * div_term                                             # (L, E/2)
    pe = jnp.zeros((max_len, embed_size), dtype=jnp.float32)
    pe = pe.at[:, 0::2].set(jnp.sin(angles))
    pe = pe.at[:, 1::2].set(jnp.cos(angles))
    return pe.astype(dtype)


# ---------------------------------------------------------------------------
# forward wrapper
# ---------------------------------------------------------------------------
@functools.partial(jax.jit, static_argnames=("donate_x",))
def positional_encoding_forward(x, pe_full, donate_x: bool = False):
    """x: (B, S, E); pe_full: (max_len, E).  Returns x + pe_full[:S] broadcast over B.

    Note: the add runs in x.dtype (PyTorch type-promotes a non-fp32 x to fp32).
    Set donate_x=True only if the caller donates x's buffer (enables in-place output).
    """
    B, S, E = x.shape
    if S > pe_full.shape[0]:
        raise ValueError(f"seq_len {S} exceeds max_len {pe_full.shape[0]}")
    if pe_full.dtype != x.dtype:
        pe_full = pe_full.astype(x.dtype)   # avoid in-kernel promotion / store mismatch

    itemsize = jnp.dtype(x.dtype).itemsize
    sub = _sublanes(itemsize)
    vmem_limit, budget = _vmem_limit_and_budget()

    # Fold part of S into the row axis when B alone is not sublane-dense.
    s1 = _choose_fold(B, S, E, sub, itemsize, budget)
    s2 = S // s1
    R, C = B * s1, s2 * E

    # Lane-dense (and, when possible, sublane-dense) 2-D views; row-major reshapes
    # are layout-preserving and free at the XLA level.
    x2 = x.reshape(R, C)
    pe2 = pe_full[:S, :].reshape(s1, C)

    tb, tc = _pick_tiles(R, C, s1, B, sub, itemsize, budget)
    # Lane axis OUTER: the PE block index is constant across the inner row/batch
    # axis, so the PE tile stays resident in VMEM across row blocks.
    grid = (pl.cdiv(C, tc), pl.cdiv(R, tb))

    out2 = pl.pallas_call(
        _pos_enc_add_kernel,
        out_shape=jax.ShapeDtypeStruct((R, C), x.dtype),
        grid_spec=pltpu.PrefetchScalarGridSpec(
            num_scalar_prefetch=0,
            grid=grid,
            in_specs=[
                pl.BlockSpec((tb, tc), lambda j, b: (b, j)),   # x tile
                pl.BlockSpec((s1, tc), lambda j, b: (0, j)),   # PE tile (row-resident)
            ],
            out_specs=pl.BlockSpec((tb, tc), lambda j, b: (b, j)),
        ),
        compiler_params=pltpu.CompilerParams(
            dimension_semantics=("parallel", "parallel"),
            vmem_limit_bytes=vmem_limit,
        ),
        input_output_aliases=({0: 0} if donate_x else {}),
    )(x2, pe2)

    return out2.reshape(B, S, E)


if __name__ == "__main__":
    MAX_LEN = 100

    # Case 1: module-default-ish small shapes (batch=2, seq=8, embed=32), fp32.
    B, S, E = 2, 8, 32
    x = jax.random.normal(jax.random.PRNGKey(0), (B, S, E), dtype=jnp.float32)
    pe_full = make_positional_encoding(E, max_len=MAX_LEN, dtype=jnp.float32)
    out = jax.block_until_ready(positional_encoding_forward(x, pe_full))
    ref = x + pe_full[None, :S, :]
    assert out.shape == (B, S, E)
    assert jnp.allclose(out, ref, atol=1e-6, rtol=1e-6), "fp32 mismatch vs reference"

    # Case 2: exercises the sublane-dense folded path (S1=8, multiple PE periods per block).
    B2, S2_, E2 = 4, 16, 64
    x2 = jax.random.normal(jax.random.PRNGKey(1), (B2, S2_, E2), dtype=jnp.float32)
    pe2_full = make_positional_encoding(E2, max_len=MAX_LEN, dtype=jnp.float32)
    out2 = jax.block_until_ready(positional_encoding_forward(x2, pe2_full))
    ref2 = x2 + pe2_full[None, :S2_, :]
    assert jnp.allclose(out2, ref2, atol=1e-6, rtol=1e-6), "folded-path mismatch"

    # Case 3: bf16 (16-sublane tiles), folded path.
    B3, S3, E3 = 4, 32, 64
    x3 = jax.random.normal(jax.random.PRNGKey(2), (B3, S3, E3), dtype=jnp.bfloat16)
    pe3_full = make_positional_encoding(E3, max_len=MAX_LEN, dtype=jnp.float32)
    out3 = jax.block_until_ready(positional_encoding_forward(x3, pe3_full))
    ref3 = x3 + pe3_full[None, :S3, :].astype(jnp.bfloat16)
    assert jnp.allclose(out3, ref3, atol=1e-2, rtol=1e-2), "bf16 mismatch"

    print("KERNEL_OK")
</pallas_src>

<mosaic_0001>
module attributes {stable_mosaic.version = 11 : i64} {
  func.func @_pos_enc_add_kernel(%arg0: i32, %arg1: i32, %arg2: memref<2x128xf32, #tpu.memory_space<vmem>>, %arg3: memref<1x128xf32, #tpu.memory_space<vmem>>, %arg4: memref<2x128xf32, #tpu.memory_space<vmem>>) attributes {dimension_semantics = [#tpu.dimension_semantics<parallel>, #tpu.dimension_semantics<parallel>], iteration_bounds = array<i64: 2, 1>, scalar_prefetch = 0 : i64, scratch_operands = 0 : i64, tpu.core_type = #tpu.core_type<tc>, window_params = [{transform_indices = @transform_0, window_bounds = array<i64: 2, 128>}, {transform_indices = @transform_1, window_bounds = array<i64: 1, 128>}, {transform_indices = @transform_2, window_bounds = array<i64: 2, 128>}]} {
    %c0 = arith.constant 0 : index
    %c0_0 = arith.constant 0 : index
    %0 = vector.load %arg2[%c0, %c0_0] : memref<2x128xf32, #tpu.memory_space<vmem>>, vector<2x128xf32>
    %c0_1 = arith.constant 0 : index
    %c0_2 = arith.constant 0 : index
    %1 = vector.load %arg3[%c0_1, %c0_2] : memref<1x128xf32, #tpu.memory_space<vmem>>, vector<1x128xf32>
    %2 = vector.broadcast %1 : vector<1x128xf32> to vector<2x128xf32>
    %3 = arith.addf %0, %2 : vector<2x128xf32>
    %c0_3 = arith.constant 0 : index
    %c0_4 = arith.constant 0 : index
    %4 = vector.load %arg4[%c0_3, %c0_4] : memref<2x128xf32, #tpu.memory_space<vmem>>, vector<2x128xf32>
    tpu.vector_store %arg4[%c0_3, %c0_4], %3 {strides = array<i32>} : memref<2x128xf32, #tpu.memory_space<vmem>>, vector<2x128xf32>,
    return
  }
  func.func @transform_0(%arg0: i32, %arg1: i32) -> (i32, i32) {
    %c0_i32 = arith.constant 0 : i32
    return %arg1, %arg0 : i32, i32
  }
  func.func @transform_1(%arg0: i32, %arg1: i32) -> (i32, i32) {
    %c0_i32 = arith.constant 0 : i32
    %c0_i32_0 = arith.constant 0 : i32
    return %c0_i32, %arg0 : i32, i32
  }
  func.func @transform_2(%arg0: i32, %arg1: i32) -> (i32, i32) {
    %c0_i32 = arith.constant 0 : i32
    return %arg1, %arg0 : i32, i32
  }
}

</mosaic_0001>

<llo_original>
// kernel: positional_encoding_forward.1
$region0: #{positional_encoding_forward.1}
  #allocation0 [shape = 'u32[]', space=smem, size = 0x4, offset = 0x4, fixed_abs, tag = 'smem constant byte address 0x4 - core index']
  #allocation1 [shape = 'u32[72,128]{1,0:T(1,128)}', space=vmem, size = 0x9000, scoped, tag = 'internal scratch']
  %s0 = inlined_call_operand.vmem [shape: f32[2,256], index: 0, kind: input, shape index: {}]
  %s1 = inlined_call_operand.vmem [shape: f32[1,256], index: 1, kind: input, shape index: {}]
  %s2 = inlined_call_operand.vmem [shape: f32[2,256], index: 2, kind: output, shape index: {}]
  %s3 = sld [smem:[#allocation0]]
  $region41: #{positional_encoding_forward.1} parent=0
    _
  %s5 = ssub.s32 1, %s3
  %s6 = scalar_select 0, %s5, %s3
  loop: start=0, step=1, limit=4
  $region2: #{positional_encoding_forward.1} parent=0 // loop_pre_header
    _
  $region3: #{positional_encoding_forward.1} parent=0 // loop_header
    %s8 = sphi 0, %s12
    %p9 = scmp.ge.s32.totalorder %s8, 4
    %s15 = sphi 0, %s27
    %s16 = sphi 0, %s23
    %s17 = sphi 0, %s15
    %s18 = sphi 0, %s16
    %s19 = sphi 0, %s17
    %s20 = sphi 0, %s18
    %s32 = sphi 0, %s34
    %s35 = sphi 0, %s32
    %s36 = sphi 0, %s35
    %s52 = sphi 0, %s36
    %s58 = sphi 0, %s60
    %s61 = sphi 0, %s58
    %s62 = sphi 0, %s61
    %s78 = sphi 0, %s62
    %s86 = sphi 0, %s88
    %s89 = sphi 0, %s86
    %s90 = sphi 0, %s89
    %s106 = sphi 0, %s90
  $region4: #{positional_encoding_forward.1} parent=0 // loop_header_branch
    %11 = sbr.rel (%p9) target = $region8
  $region5: #{positional_encoding_forward.1} parent=0 // loop_body
    %s13 = ssub.s32 %s8, 1
    %s14 = ssub.s32 %s8, 2
    %s21 = sadd.s32 1, %s16
    %p22 = scmp.ge.s32.totalorder %s21, 1
    %s23 = scalar_select %p22, 0, %s21
    %s24 = sadd.s32 1, %s15
    %s25 = scalar_select %p22, %s24, %s15
    %p26 = scmp.ge.s32.totalorder %s25, 2
    %s27 = scalar_select %p26, 0, %s25
    %s28 = ssub.s32 %s16, %s23
    %s29 = ssub.s32 %s15, %s27
    %s30 = sor.u32 %s28, %s29
    %p31 = scmp.eq.s32.totalorder %s30, 0
    %s33 = sadd.s32 %s32, 1
    %s34 = scalar_select %p31, %s32, %s33
    %p37 = pneg %p31
    %p38 = scmp.eq.s32.totalorder %s8, 1
    %p39 = por %p37, %p38
    %p40 = scmp.ne.s32.totalorder %s32, %s35
    %p41 = scmp.eq.s32.totalorder %s8, 0
    %p42 = por %p40, %p41
    %p43 = scmp.ne.s32.totalorder %s32, %s35
    %p44 = scmp.eq.s32.totalorder %s13, 1
    %p45 = por %p43, %p44
    %p46 = scmp.ne.s32.totalorder %s35, %s36
    %p47 = scmp.eq.s32.totalorder %s13, 0
    %p48 = por %p46, %p47
    %p49 = scmp.ne.s32.totalorder %s35, %s36
    %p50 = scmp.eq.s32.totalorder %s14, 1
    %p51 = por %p49, %p50
    %p53 = scmp.ne.s32.totalorder %s36, %s52
    %p54 = scmp.eq.s32.totalorder %s14, 0
    %p55 = por %p53, %p54
    %s56 = ssub.s32 %s15, %s27
    %p57 = scmp.eq.s32.totalorder %s56, 0
    %s59 = sadd.s32 %s58, 1
    %s60 = scalar_select %p57, %s58, %s59
    %p63 = pneg %p57
    %p64 = scmp.eq.s32.totalorder %s8, 1
    %p65 = por %p63, %p64
    %p66 = scmp.ne.s32.totalorder %s58, %s61
    %p67 = scmp.eq.s32.totalorder %s8, 0
    %p68 = por %p66, %p67
    %p69 = scmp.ne.s32.totalorder %s58, %s61
    %p70 = scmp.eq.s32.totalorder %s13, 1
    %p71 = por %p69, %p70
    %p72 = scmp.ne.s32.totalorder %s61, %s62
    %p73 = scmp.eq.s32.totalorder %s13, 0
    %p74 = por %p72, %p73
    %p75 = scmp.ne.s32.totalorder %s61, %s62
    %p76 = scmp.eq.s32.totalorder %s14, 1
    %p77 = por %p75, %p76
    %p79 = scmp.ne.s32.totalorder %s62, %s78
    %p80 = scmp.eq.s32.totalorder %s14, 0
    %p81 = por %p79, %p80
    %s82 = ssub.s32 %s16, %s23
    %s83 = ssub.s32 %s15, %s27
    %s84 = sor.u32 %s82, %s83
    %p85 = scmp.eq.s32.totalorder %s84, 0
    %s87 = sadd.s32 %s86, 1
    %s88 = scalar_select %p85, %s86, %s87
    %p91 = pneg %p85
    %p92 = scmp.eq.s32.totalorder %s8, 1
    %p93 = por %p91, %p92
    %p94 = scmp.ne.s32.totalorder %s86, %s89
    %p95 = scmp.eq.s32.totalorder %s8, 0
    %p96 = por %p94, %p95
    %p97 = scmp.ne.s32.totalorder %s86, %s89
    %p98 = scmp.eq.s32.totalorder %s13, 1
    %p99 = por %p97, %p98
    %p100 = scmp.ne.s32.totalorder %s89, %s90
    %p101 = scmp.eq.s32.totalorder %s13, 0
    %p102 = por %p100, %p101
    %p103 = scmp.ne.s32.totalorder %s89, %s90
    %p104 = scmp.eq.s32.totalorder %s14, 1
    %p105 = por %p103, %p104
    %p107 = scmp.ne.s32.totalorder %s90, %s106
    %p108 = scmp.eq.s32.totalorder %s14, 0
    %p109 = por %p107, %p108
    %p110 = scmp.le.s32.totalorder 1, %s8
    %p111 = scmp.lt.s32.totalorder %s8, 3
    %p112 = pnand %p110, %p111
    %p113 = pneg %p112
    // Predicated region
    $region9: #{positional_encoding_forward.1} parent=5 // pred_check
      _
    $region10: #{positional_encoding_forward.1} parent=5 // pred_check_branch
      %115 = sbr.rel (%p112) target = $region12
    $region11: #{positional_encoding_forward.1} parent=5 // pred_region
      %s116 = ssub.s32 %s8, 1
    $region12: #{positional_encoding_forward.1} parent=5 // pred_fallthru
      _
    %p117 = scmp.lt.s32.totalorder %s8, 2
    // Predicated region
    $region13: #{positional_encoding_forward.1} parent=5 // pred_check
      %p118 = pneg %p117
    $region14: #{positional_encoding_forward.1} parent=5 // pred_check_branch
      %120 = sbr.rel (%p118) target = $region16
    $region15: #{positional_encoding_forward.1} parent=5 // pred_region
      // Predicated region
      $region17: #{positional_encoding_forward.1} parent=15 // pred_check
        %p121 = pneg %p42
      $region18: #{positional_encoding_forward.1} parent=15 // pred_check_branch
        %123 = sbr.rel (%p121) target = $region20
      $region19: #{positional_encoding_forward.1} parent=15 // pred_region
        %p124 = scmp.lt.s32.totalorder %s16, 0
        %s125 = scalar_select %p124, %s16, 0
        %p126 = scmp.lt.s32.totalorder %s15, 1
        %s127 = scalar_select %p126, %s15, 1
        %s128 = smul.addr %s125, 2
        %s129 = sadd.s32 %s127, %s128
        %s130 = smul.addr %s129, 2
        %s131 = scalar_lea.vmem %s0, %s130
      $region20: #{positional_encoding_forward.1} parent=15 // pred_fallthru
        _
      // Predicated region
      $region21: #{positional_encoding_forward.1} parent=15 // pred_check
        %p132 = pneg %p68
      $region22: #{positional_encoding_forward.1} parent=15 // pred_check_branch
        %134 = sbr.rel (%p132) target = $region24
      $region23: #{positional_encoding_forward.1} parent=15 // pred_region
        %p135 = scmp.lt.s32.totalorder %s15, 1
        %s136 = scalar_select %p135, %s15, 1
        %s137 = scalar_lea.vmem %s1, %s136
      $region24: #{positional_encoding_forward.1} parent=15 // pred_fallthru
        _
    $region16: #{positional_encoding_forward.1} parent=5 // pred_fallthru
      _
    %p138 = scmp.le.s32.totalorder 1, %s8
    %p139 = scmp.lt.s32.totalorder %s8, 3
    %p140 = pnand %p138, %p139
    %p141 = pneg %p140
    // Predicated region
    $region25: #{positional_encoding_forward.1} parent=5 // pred_check
      _
    $region26: #{positional_encoding_forward.1} parent=5 // pred_check_branch
      %143 = sbr.rel (%p140) target = $region28
    $region27: #{positional_encoding_forward.1} parent=5 // pred_region
      %s144 = ssub.s32 %s8, 1
      %p145 = scmp.lt.s32.totalorder %s18, 0
      %s146 = scalar_select %p145, %s18, 0
      %p147 = scmp.lt.s32.totalorder %s17, 1
      %s148 = scalar_select %p147, %s17, 1
      %s149 = smul.addr %s146, 2
      %s150 = sadd.s32 %s148, %s149
      %s151 = smul.addr %s150, 2
      %s152 = scalar_lea.vmem %s0, %s151
      %p153 = pneg %p48
      %p154 = pneg %p45
      %p155 = scmp.lt.s32.totalorder %s17, 1
      %s156 = scalar_select %p155, %s17, 1
      %s157 = scalar_lea.vmem %s1, %s156
      %p158 = pneg %p74
      %p159 = pneg %p71
      %p160 = pneg %p102
      %p161 = pneg %p99
      %p162 = scmp.lt.s32.totalorder %s18, 0
      %s163 = scalar_select %p162, %s18, 0
      %p164 = scmp.lt.s32.totalorder %s17, 1
      %s165 = scalar_select %p164, %s17, 1
      %s166 = smul.addr %s163, 2
      %s167 = sadd.s32 %s165, %s166
      %s168 = smul.addr %s167, 2
      %s169 = scalar_lea.vmem %s2, %s168
      %p170 = scmp.lt.s32.totalorder %s18, 0
      %s171 = scalar_select %p170, %s18, 0
      %p172 = scmp.lt.s32.totalorder %s17, 1
      %s173 = scalar_select %p172, %s17, 1
      %s174 = smul.addr %s171, 2
      %s175 = sadd.s32 %s173, %s174
      %s176 = smul.addr %s175, 2
      %s177 = scalar_lea.vmem %s0, %s176
      %p178 = scmp.lt.s32.totalorder %s17, 1
      %s179 = scalar_select %p178, %s17, 1
      %s180 = scalar_lea.vmem %s1, %s179
      %p181 = scmp.lt.s32.totalorder %s18, 0
      %s182 = scalar_select %p181, %s18, 0
      %p183 = scmp.lt.s32.totalorder %s17, 1
      %s184 = scalar_select %p183, %s17, 1
      %s185 = smul.addr %s182, 2
      %s186 = sadd.s32 %s184, %s185
      %s187 = smul.addr %s186, 2
      %s188 = scalar_lea.vmem %s2, %s187
      %v189 = vld [vmem:[%s177] sm:$0x3]
      %v190 = vld [vmem:[%s180] sm:$0x1]
      %v192 = vperm.slane %v190, 0
      %v194 = vadd.f32 %v189, %v192
      %195 = vst [vmem:[%s188] sm:$0x3] %v194
      %p196 = scmp.lt.s32.totalorder %s18, 0
      %s197 = scalar_select %p196, %s18, 0
      %p198 = scmp.lt.s32.totalorder %s17, 1
      %s199 = scalar_select %p198, %s17, 1
      %s200 = smul.addr %s197, 2
      %s201 = sadd.s32 %s199, %s200
      %s202 = smul.addr %s201, 2
      %s203 = scalar_lea.vmem %s2, %s202
      // Predicated region
      $region29: #{positional_encoding_forward.1} parent=27 // pred_check
        %p204 = pneg %p99
      $region30: #{positional_encoding_forward.1} parent=27 // pred_check_branch
        %206 = sbr.rel (%p204) target = $region32
      $region31: #{positional_encoding_forward.1} parent=27 // pred_region
        _
      $region32: #{positional_encoding_forward.1} parent=27 // pred_fallthru
        _
    $region28: #{positional_encoding_forward.1} parent=5 // pred_fallthru
      _
    %p207 = scmp.le.s32.totalorder 2, %s8
    // Predicated region
    $region33: #{positional_encoding_forward.1} parent=5 // pred_check
      %p208 = pneg %p207
    $region34: #{positional_encoding_forward.1} parent=5 // pred_check_branch
      %210 = sbr.rel (%p208) target = $region36
    $region35: #{positional_encoding_forward.1} parent=5 // pred_region
      %s211 = ssub.s32 %s8, 2
      // Predicated region
      $region37: #{positional_encoding_forward.1} parent=35 // pred_check
        %p212 = pneg %p105
      $region38: #{positional_encoding_forward.1} parent=35 // pred_check_branch
        %214 = sbr.rel (%p212) target = $region40
      $region39: #{positional_encoding_forward.1} parent=35 // pred_region
        %p215 = scmp.lt.s32.totalorder %s20, 0
        %s216 = scalar_select %p215, %s20, 0
        %p217 = scmp.lt.s32.totalorder %s19, 1
        %s218 = scalar_select %p217, %s19, 1
        %s219 = smul.addr %s216, 2
        %s220 = sadd.s32 %s218, %s219
        %s221 = smul.addr %s220, 2
        %s222 = scalar_lea.vmem %s2, %s221
      $region40: #{positional_encoding_forward.1} parent=35 // pred_fallthru
        _
    $region36: #{positional_encoding_forward.1} parent=5 // pred_fallthru
      _
  $region6: #{positional_encoding_forward.1} parent=0 // loop_footer
    %s12 = sadd.s32 1, %s8
  $region7: #{positional_encoding_forward.1} parent=0 // loop_footer_branch
    %7 = sbr.rel target = $region3
  $region8: #{positional_encoding_forward.1} parent=0 // loop_exit
    _

</llo_original>
